<compile_context>
chip_gen: v6e
topology: v6e:2x2x1
jax: 0.10.0
libtpu: 0.0.40
codegen_flags: <defaults>
</compile_context>

<pallas_src>
import functools
import math

import jax
import jax.numpy as jnp
from jax.experimental import pallas as pl
from jax.experimental.pallas import tpu as pltpu


def _round_up(a: int, b: int) -> int:
    return ((a + b - 1) // b) * b


def _vmem_tile_bytes(shape, dtype) -> int:
    """Approximate VMEM footprint of one buffer (lane/sublane padded)."""
    itemsize = jnp.dtype(dtype).itemsize
    dims = list(shape)
    if not dims:
        return itemsize
    dims[-1] = _round_up(dims[-1], 128)                     # lane dim
    if len(dims) >= 2:
        sublane = 8 * max(1, 4 // itemsize)                 # 8 f32 / 16 bf16
        dims[-2] = _round_up(dims[-2], sublane)
    n = 1
    for d in dims:
        n *= d
    return n * itemsize


def fnn_kernel(x_ref, w1_ref, b1_ref, w2_ref, b2_ref, o_ref, *,
               gelu_approximate: bool):
    """Fused FNN forward for one row tile.

    x_ref : (TM, E)  bf16/f32  VMEM (tiled over the row grid)
    w1_ref: (E,  H)  bf16/f32  VMEM (resident)
    b1_ref: (1,  H)  f32       VMEM (resident)
    w2_ref: (1,  H)  f32       VMEM (resident, row layout)
    b2_ref: (1,)     f32       SMEM (scalar)
    o_ref : (1, 1, TM) f32     VMEM (lane-dense output row)
    """
    # Linear 1 on the MXU; f32 accumulation regardless of operand dtype.
    h = jnp.dot(x_ref[...], w1_ref[...], preferred_element_type=jnp.float32)
    h = h + b1_ref[...]

    if gelu_approximate:
        # tanh-GELU: transcendental lands on the EUP slot (nearly free once
        # the MXU runs at bf16 speed).  Numerics differ slightly from the
        # PyTorch default exact GELU, hence gated behind a flag.
        h = jax.nn.gelu(h, approximate=True)
    else:
        # Exact GELU (PyTorch default): 0.5 * x * (1 + erf(x / sqrt(2))).
        h = 0.5 * h * (1.0 + jax.lax.erf(h * jnp.float32(1.0 / math.sqrt(2.0))))

    # Dropout -> identity (eval mode).

    # Linear 2 (H -> 1) as VPU multiply + cross-lane reduce; the (TM,) result
    # is stored lane-dense (unmasked vst when TM is a multiple of 128).
    y = jnp.sum(h * w2_ref[...], axis=-1) + b2_ref[0]
    y = jax.nn.sigmoid(y)
    o_ref[...] = y.reshape(o_ref.shape).astype(o_ref.dtype)


def _choose_block_m(m: int, block_m: int, embed_dim: int, x_dtype,
                    vmem_cap: int) -> int:
    """Row-tile size: multiple of 128, >= 2 tiles when possible (v7x megacore
    balance), minimal padding, capped so the double-buffered x tile fits."""
    if m <= 128:
        # One exact block equal to the full row extent (no padding at all).
        return m
    cap = max(128, min(block_m, 2048))
    cap -= cap % 128
    nt = pl.cdiv(m, cap)            # minimum tile count at the largest size
    if nt % 2:                      # prefer an even tile count for 2 TCs
        nt += 1
    bm = _round_up(pl.cdiv(m, nt), 128)
    # Cap the double-buffered x tile at ~30% of physical VMEM.
    x_budget = max(8 << 20, int(0.30 * vmem_cap))
    while bm > 128 and 2 * _vmem_tile_bytes((bm, embed_dim), x_dtype) > x_budget:
        bm = max(128, (bm // 2) // 128 * 128)
    return bm


def fnn_forward(x, w1, b1, w2, b2, *, block_m: int = 1024,
                use_bf16_matmul: bool = True,
                gelu_approximate: bool = False):
    """x: (batch, seq, embed_dim) f32 -> (batch, seq, 1) f32.

    w1: (embed_dim, inter_dim), b1: (inter_dim,),
    w2: (inter_dim, 1) or (inter_dim,), b2: (1,) or scalar.
    """
    batch, seq, embed_dim = x.shape
    inter_dim = w1.shape[1]
    m = batch * seq

    # bf16 MXU operands (f32 accumulate) are native on v5e/v6e/v7x and halve
    # HBM/VMEM bytes for x and w1.  The cast happens once here in the wrapper
    # (XLA), never per grid step inside the kernel.
    mm_dtype = jnp.bfloat16 if use_bf16_matmul else jnp.float32

    try:
        vmem_cap = int(pltpu.get_tpu_info().vmem_capacity_bytes)
    except Exception:
        vmem_cap = 64 * 1024 * 1024          # v7x per-core size (smallest)

    bm = _choose_block_m(m, block_m, embed_dim, mm_dtype, vmem_cap)
    num_tiles = pl.cdiv(m, bm)               # ragged last block; NO jnp.pad

    x2d = x.reshape(m, embed_dim).astype(mm_dtype)
    w1c = w1.astype(mm_dtype)
    b1_2d = b1.reshape(1, inter_dim).astype(jnp.float32)
    w2_row = w2.reshape(1, inter_dim).astype(jnp.float32)   # row layout
    b2_1d = jnp.asarray(b2, jnp.float32).reshape(1)

    kernel = functools.partial(fnn_kernel, gelu_approximate=gelu_approximate)

    # VMEM limit from actual padded buffer sizes (assume everything is
    # double-buffered - conservative) plus headroom for Mosaic scratch.
    needed = (2 * _vmem_tile_bytes((bm, embed_dim), mm_dtype)
              + 2 * _vmem_tile_bytes((embed_dim, inter_dim), mm_dtype)
              + 4 * _vmem_tile_bytes((1, inter_dim), jnp.float32)
              + 2 * _vmem_tile_bytes((1, 1, bm), jnp.float32))
    vmem_limit = min(max(needed + (8 << 20), 32 << 20), int(0.80 * vmem_cap))
    vmem_limit = max(vmem_limit, needed + (4 << 20))

    mm_bytes = jnp.dtype(mm_dtype).itemsize
    cost = pl.CostEstimate(
        flops=2 * m * embed_dim * inter_dim + 2 * m * inter_dim,
        transcendentals=m * inter_dim + m,           # gelu + sigmoid
        bytes_accessed=(m * embed_dim * mm_bytes
                        + embed_dim * inter_dim * mm_bytes
                        + 2 * inter_dim * 4 + 4
                        + num_tiles * bm * 4),
    )

    def make_call(single_buffer_weights: bool):
        resident = ({"pipeline_mode": pl.Buffered(1)}
                    if single_buffer_weights else {})
        in_specs = [
            pl.BlockSpec((bm, embed_dim), lambda i: (i, 0)),               # x tile
            pl.BlockSpec((embed_dim, inter_dim), lambda i: (0, 0),
                         **resident),                                      # w1 resident
            pl.BlockSpec((1, inter_dim), lambda i: (0, 0), **resident),    # b1 resident
            pl.BlockSpec((1, inter_dim), lambda i: (0, 0), **resident),    # w2 resident
            pl.BlockSpec(memory_space=pltpu.MemorySpace.SMEM),             # b2 scalar
        ]
        return pl.pallas_call(
            kernel,
            out_shape=jax.ShapeDtypeStruct((num_tiles, 1, bm), jnp.float32),
            grid=(num_tiles,),
            in_specs=in_specs,
            out_specs=pl.BlockSpec((1, 1, bm), lambda i: (i, 0, 0)),       # lane-dense
            compiler_params=pltpu.CompilerParams(
                dimension_semantics=("parallel",),   # shard rows over TCs
                vmem_limit_bytes=int(vmem_limit),
            ),
            cost_estimate=cost,
        )

    args = (x2d, w1c, b1_2d, w2_row, b2_1d)
    try:
        # Request single-buffered VMEM-resident weights (constant index maps).
        out = make_call(True)(*args)
    except Exception:
        # pipeline_mode unsupported in this build: fall back to default
        # double-buffering (correct, just uses more VMEM).
        out = make_call(False)(*args)

    # Ragged last block: rows >= m contain garbage and are discarded here.
    out_flat = out.reshape(num_tiles * bm)[:m]
    return out_flat.reshape(batch, seq, 1)


def init_params(key, embed_dim, inter_dim):
    """PyTorch-style Linear init: U(-1/sqrt(fan_in), 1/sqrt(fan_in)).

    Weights stored transposed relative to torch: (in_features, out_features).
    """
    k1, k2, k3, k4 = jax.random.split(key, 4)
    bound1 = 1.0 / math.sqrt(embed_dim)
    bound2 = 1.0 / math.sqrt(inter_dim)
    w1 = jax.random.uniform(k1, (embed_dim, inter_dim), jnp.float32, -bound1, bound1)
    b1 = jax.random.uniform(k2, (inter_dim,), jnp.float32, -bound1, bound1)
    w2 = jax.random.uniform(k3, (inter_dim, 1), jnp.float32, -bound2, bound2)
    b2 = jax.random.uniform(k4, (1,), jnp.float32, -bound2, bound2)
    return w1, b1, w2, b2


def _reference(x, w1, b1, w2, b2):
    batch, seq, embed_dim = x.shape
    h = x.reshape(-1, embed_dim) @ w1 + b1
    h = 0.5 * h * (1.0 + jax.lax.erf(h * jnp.float32(1.0 / math.sqrt(2.0))))
    y = jax.nn.sigmoid(h @ w2.reshape(-1, 1) + b2)
    return y.reshape(batch, seq, 1)


if __name__ == "__main__":
    key = jax.random.PRNGKey(0)

    # Small shape consistent with the module (single grid tile, no padding).
    batch, seq, embed_dim, inter_dim = 2, 8, 32, 64
    k_x, k_p, k_x2 = jax.random.split(key, 3)
    x = jax.random.normal(k_x, (batch, seq, embed_dim), jnp.float32)
    w1, b1, w2, b2 = init_params(k_p, embed_dim, inter_dim)
    ref = _reference(x, w1, b1, w2, b2)

    # Exact-f32 path (bit-comparable to the PyTorch fp32 module).
    out_f32 = jax.block_until_ready(
        fnn_forward(x, w1, b1, w2, b2, use_bf16_matmul=False))
    assert out_f32.shape == (batch, seq, 1)
    assert jnp.allclose(out_f32, ref, atol=1e-5, rtol=1e-5)

    # Default bf16-operand path (f32 accumulation) - looser tolerance.
    out_bf16 = jax.block_until_ready(fnn_forward(x, w1, b1, w2, b2))
    assert out_bf16.shape == (batch, seq, 1)
    assert jnp.allclose(out_bf16, ref, atol=1e-2, rtol=1e-2)

    # Shape with multiple grid tiles and a ragged last block (M = 600).
    batch2, seq2 = 3, 200
    x2 = jax.random.normal(k_x2, (batch2, seq2, embed_dim), jnp.float32)
    ref2 = _reference(x2, w1, b1, w2, b2)
    out2_f32 = jax.block_until_ready(
        fnn_forward(x2, w1, b1, w2, b2, use_bf16_matmul=False))
    assert out2_f32.shape == (batch2, seq2, 1)
    assert jnp.allclose(out2_f32, ref2, atol=1e-5, rtol=1e-5)
    out2_bf16 = jax.block_until_ready(fnn_forward(x2, w1, b1, w2, b2))
    assert jnp.allclose(out2_bf16, ref2, atol=1e-2, rtol=1e-2)

    print("KERNEL_OK")
</pallas_src>

<mosaic_0001>
module attributes {stable_mosaic.version = 11 : i64} {
  func.func @fnn_kernel(%arg0: i32, %arg1: memref<16x32xf32, #tpu.memory_space<vmem>>, %arg2: memref<32x64xf32, #tpu.memory_space<vmem>>, %arg3: memref<1x64xf32, #tpu.memory_space<vmem>>, %arg4: memref<1x64xf32, #tpu.memory_space<vmem>>, %arg5: memref<1xf32, #tpu.memory_space<smem>>, %arg6: memref<1x1x16xf32, #tpu.memory_space<vmem>>) attributes {dimension_semantics = [#tpu.dimension_semantics<parallel>], iteration_bounds = array<i64: 1>, scalar_prefetch = 0 : i64, scratch_operands = 0 : i64, tpu.core_type = #tpu.core_type<tc>, window_params = [{transform_indices = @transform_0, window_bounds = array<i64: 16, 32>}, {pipeline_mode = #tpu.pipeline_mode<synchronous>, transform_indices = @transform_1, window_bounds = array<i64: 32, 64>}, {pipeline_mode = #tpu.pipeline_mode<synchronous>, transform_indices = @transform_2, window_bounds = array<i64: 1, 64>}, {pipeline_mode = #tpu.pipeline_mode<synchronous>, transform_indices = @transform_3, window_bounds = array<i64: 1, 64>}, {transform_indices = @transform_4, window_bounds = array<i64: 1>}, {transform_indices = @transform_5, window_bounds = array<i64: 1, 1, 16>}]} {
    %c0 = arith.constant 0 : index
    %c0_0 = arith.constant 0 : index
    %0 = vector.load %arg1[%c0, %c0_0] : memref<16x32xf32, #tpu.memory_space<vmem>>, vector<16x32xf32>
    %c0_1 = arith.constant 0 : index
    %c0_2 = arith.constant 0 : index
    %1 = vector.load %arg2[%c0_1, %c0_2] : memref<32x64xf32, #tpu.memory_space<vmem>>, vector<32x64xf32>
    %cst = arith.constant dense<0.000000e+00> : vector<16x64xf32>
    %2 = tpu.matmul %0, %1, %cst {dimension_numbers = #tpu.dot_dimension_numbers<[1], [0], [0], [1], [0, 0, 1, 1], [], []>} : vector<16x32xf32>, vector<32x64xf32>, vector<16x64xf32> -> vector<16x64xf32>
    %c0_3 = arith.constant 0 : index
    %c0_4 = arith.constant 0 : index
    %3 = vector.load %arg3[%c0_3, %c0_4] : memref<1x64xf32, #tpu.memory_space<vmem>>, vector<1x64xf32>
    %4 = vector.broadcast %3 : vector<1x64xf32> to vector<16x64xf32>
    %5 = arith.addf %2, %4 : vector<16x64xf32>
    %cst_5 = arith.constant 5.000000e-01 : f32
    %6 = vector.broadcast %cst_5 : f32 to vector<16x64xf32>
    %7 = arith.mulf %6, %5 : vector<16x64xf32>
    %cst_6 = arith.constant 0.707106769 : f32
    %8 = vector.broadcast %cst_6 : f32 to vector<16x64xf32>
    %9 = arith.mulf %5, %8 : vector<16x64xf32>
    %10 = math.erf %9 : vector<16x64xf32>
    %cst_7 = arith.constant 1.000000e+00 : f32
    %11 = vector.broadcast %cst_7 : f32 to vector<16x64xf32>
    %12 = arith.addf %11, %10 : vector<16x64xf32>
    %13 = arith.mulf %7, %12 : vector<16x64xf32>
    %c0_8 = arith.constant 0 : index
    %c0_9 = arith.constant 0 : index
    %14 = vector.load %arg4[%c0_8, %c0_9] : memref<1x64xf32, #tpu.memory_space<vmem>>, vector<1x64xf32>
    %15 = vector.broadcast %14 : vector<1x64xf32> to vector<16x64xf32>
    %16 = arith.mulf %13, %15 : vector<16x64xf32>
    %cst_10 = arith.constant dense<0.000000e+00> : vector<16xf32>
    %17 = vector.multi_reduction <add>, %16, %cst_10 [1] : vector<16x64xf32> to vector<16xf32>
    %c0_11 = arith.constant 0 : index
    %18 = memref.load %arg5[%c0_11] : memref<1xf32, #tpu.memory_space<smem>>
    %19 = vector.broadcast %18 : f32 to vector<16xf32>
    %20 = arith.addf %17, %19 : vector<16xf32>
    %21 = arith.negf %20 : vector<16xf32>
    %22 = math.exp %21 : vector<16xf32>
    %cst_12 = arith.constant 1.000000e+00 : f32
    %23 = vector.broadcast %cst_12 : f32 to vector<16xf32>
    %24 = arith.addf %23, %22 : vector<16xf32>
    %25 = arith.divf %23, %24 : vector<16xf32>
    %26 = vector.shape_cast %25 : vector<16xf32> to vector<1x1x16xf32>
    %c0_13 = arith.constant 0 : index
    %c0_14 = arith.constant 0 : index
    %c0_15 = arith.constant 0 : index
    %27 = vector.load %arg6[%c0_13, %c0_14, %c0_15] : memref<1x1x16xf32, #tpu.memory_space<vmem>>, vector<1x1x16xf32>
    tpu.vector_store %arg6[%c0_13, %c0_14, %c0_15], %26 {strides = array<i32>} : memref<1x1x16xf32, #tpu.memory_space<vmem>>, vector<1x1x16xf32>,
    return
  }
  func.func @transform_0(%arg0: i32) -> (i32, i32) {
    %c0_i32 = arith.constant 0 : i32
    %c0_i32_0 = arith.constant 0 : i32
    return %arg0, %c0_i32 : i32, i32
  }
  func.func @transform_1(%arg0: i32) -> (i32, i32) {
    %c0_i32 = arith.constant 0 : i32
    %c0_i32_0 = arith.constant 0 : i32
    %c0_i32_1 = arith.constant 0 : i32
    return %c0_i32, %c0_i32_0 : i32, i32
  }
  func.func @transform_2(%arg0: i32) -> (i32, i32) {
    %c0_i32 = arith.constant 0 : i32
    %c0_i32_0 = arith.constant 0 : i32
    %c0_i32_1 = arith.constant 0 : i32
    return %c0_i32, %c0_i32_0 : i32, i32
  }
  func.func @transform_3(%arg0: i32) -> (i32, i32) {
    %c0_i32 = arith.constant 0 : i32
    %c0_i32_0 = arith.constant 0 : i32
    %c0_i32_1 = arith.constant 0 : i32
    return %c0_i32, %c0_i32_0 : i32, i32
  }
  func.func @transform_4(%arg0: i32) -> i32 {
    %c0_i32 = arith.constant 0 : i32
    %c0_i32_0 = arith.constant 0 : i32
    return %c0_i32 : i32
  }
  func.func @transform_5(%arg0: i32) -> (i32, i32, i32) {
    %c0_i32 = arith.constant 0 : i32
    %c0_i32_0 = arith.constant 0 : i32
    %c0_i32_1 = arith.constant 0 : i32
    return %arg0, %c0_i32, %c0_i32_0 : i32, i32, i32
  }
}

module attributes {stable_mosaic.version = 11 : i64} {
  func.func @fnn_kernel(%arg0: i32, %arg1: memref<16x32xf32, #tpu.memory_space<vmem>>, %arg2: memref<32x64xf32, #tpu.memory_space<vmem>>, %arg3: memref<1x64xf32, #tpu.memory_space<vmem>>, %arg4: memref<1x64xf32, #tpu.memory_space<vmem>>, %arg5: memref<1xf32, #tpu.memory_space<smem>>, %arg6: memref<1x1x16xf32, #tpu.memory_space<vmem>>) attributes {dimension_semantics = [#tpu.dimension_semantics<parallel>], iteration_bounds = array<i64: 1>, scalar_prefetch = 0 : i64, scratch_operands = 0 : i64, tpu.core_type = #tpu.core_type<tc>, window_params = [{transform_indices = @transform_0, window_bounds = array<i64: 16, 32>}, {pipeline_mode = #tpu.pipeline_mode<synchronous>, transform_indices = @transform_1, window_bounds = array<i64: 32, 64>}, {pipeline_mode = #tpu.pipeline_mode<synchronous>, transform_indices = @transform_2, window_bounds = array<i64: 1, 64>}, {pipeline_mode = #tpu.pipeline_mode<synchronous>, transform_indices = @transform_3, window_bounds = array<i64: 1, 64>}, {transform_indices = @transform_4, window_bounds = array<i64: 1>}, {transform_indices = @transform_5, window_bounds = array<i64: 1, 1, 16>}]} {
    %c0 = arith.constant 0 : index
    %c0_0 = arith.constant 0 : index
    %0 = vector.load %arg1[%c0, %c0_0] : memref<16x32xf32, #tpu.memory_space<vmem>>, vector<16x32xf32>
    %c0_1 = arith.constant 0 : index
    %c0_2 = arith.constant 0 : index
    %1 = vector.load %arg2[%c0_1, %c0_2] : memref<32x64xf32, #tpu.memory_space<vmem>>, vector<32x64xf32>
    %cst = arith.constant dense<0.000000e+00> : vector<16x64xf32>
    %2 = tpu.matmul %0, %1, %cst {dimension_numbers = #tpu.dot_dimension_numbers<[1], [0], [0], [1], [0, 0, 1, 1], [], []>} : vector<16x32xf32>, vector<32x64xf32>, vector<16x64xf32> -> vector<16x64xf32>
    %c0_3 = arith.constant 0 : index
    %c0_4 = arith.constant 0 : index
    %3 = vector.load %arg3[%c0_3, %c0_4] : memref<1x64xf32, #tpu.memory_space<vmem>>, vector<1x64xf32>
    %4 = vector.broadcast %3 : vector<1x64xf32> to vector<16x64xf32>
    %5 = arith.addf %2, %4 : vector<16x64xf32>
    %cst_5 = arith.constant 5.000000e-01 : f32
    %6 = vector.broadcast %cst_5 : f32 to vector<16x64xf32>
    %7 = arith.mulf %6, %5 : vector<16x64xf32>
    %cst_6 = arith.constant 0.707106769 : f32
    %8 = vector.broadcast %cst_6 : f32 to vector<16x64xf32>
    %9 = arith.mulf %5, %8 : vector<16x64xf32>
    %10 = math.erf %9 : vector<16x64xf32>
    %cst_7 = arith.constant 1.000000e+00 : f32
    %11 = vector.broadcast %cst_7 : f32 to vector<16x64xf32>
    %12 = arith.addf %11, %10 : vector<16x64xf32>
    %13 = arith.mulf %7, %12 : vector<16x64xf32>
    %c0_8 = arith.constant 0 : index
    %c0_9 = arith.constant 0 : index
    %14 = vector.load %arg4[%c0_8, %c0_9] : memref<1x64xf32, #tpu.memory_space<vmem>>, vector<1x64xf32>
    %15 = vector.broadcast %14 : vector<1x64xf32> to vector<16x64xf32>
    %16 = arith.mulf %13, %15 : vector<16x64xf32>
    %cst_10 = arith.constant dense<0.000000e+00> : vector<16xf32>
    %17 = vector.multi_reduction <add>, %16, %cst_10 [1] : vector<16x64xf32> to vector<16xf32>
    %c0_11 = arith.constant 0 : index
    %18 = memref.load %arg5[%c0_11] : memref<1xf32, #tpu.memory_space<smem>>
    %19 = vector.broadcast %18 : f32 to vector<16xf32>
    %20 = arith.addf %17, %19 : vector<16xf32>
    %21 = arith.negf %20 : vector<16xf32>
    %22 = math.exp %21 : vector<16xf32>
    %cst_12 = arith.constant 1.000000e+00 : f32
    %23 = vector.broadcast %cst_12 : f32 to vector<16xf32>
    %24 = arith.addf %23, %22 : vector<16xf32>
    %25 = arith.divf %23, %24 : vector<16xf32>
    %26 = vector.shape_cast %25 : vector<16xf32> to vector<1x1x16xf32>
    %c0_13 = arith.constant 0 : index
    %c0_14 = arith.constant 0 : index
    %c0_15 = arith.constant 0 : index
    %27 = vector.load %arg6[%c0_13, %c0_14, %c0_15] : memref<1x1x16xf32, #tpu.memory_space<vmem>>, vector<1x1x16xf32>
    tpu.vector_store %arg6[%c0_13, %c0_14, %c0_15], %26 {strides = array<i32>} : memref<1x1x16xf32, #tpu.memory_space<vmem>>, vector<1x1x16xf32>,
    return
  }
  func.func @transform_0(%arg0: i32) -> (i32, i32) {
    %c0_i32 = arith.constant 0 : i32
    %c0_i32_0 = arith.constant 0 : i32
    return %arg0, %c0_i32 : i32, i32
  }
  func.func @transform_1(%arg0: i32) -> (i32, i32) {
    %c0_i32 = arith.constant 0 : i32
    %c0_i32_0 = arith.constant 0 : i32
    %c0_i32_1 = arith.constant 0 : i32
    return %c0_i32, %c0_i32_0 : i32, i32
  }
  func.func @transform_2(%arg0: i32) -> (i32, i32) {
    %c0_i32 = arith.constant 0 : i32
    %c0_i32_0 = arith.constant 0 : i32
    %c0_i32_1 = arith.constant 0 : i32
    return %c0_i32, %c0_i32_0 : i32, i32
  }
  func.func @transform_3(%arg0: i32) -> (i32, i32) {
    %c0_i32 = arith.constant 0 : i32
    %c0_i32_0 = arith.constant 0 : i32
    %c0_i32_1 = arith.constant 0 : i32
    return %c0_i32, %c0_i32_0 : i32, i32
  }
  func.func @transform_4(%arg0: i32) -> i32 {
    %c0_i32 = arith.constant 0 : i32
    %c0_i32_0 = arith.constant 0 : i32
    return %c0_i32 : i32
  }
  func.func @transform_5(%arg0: i32) -> (i32, i32, i32) {
    %c0_i32 = arith.constant 0 : i32
    %c0_i32_0 = arith.constant 0 : i32
    %c0_i32_1 = arith.constant 0 : i32
    return %arg0, %c0_i32, %c0_i32_0 : i32, i32, i32
  }
}

</mosaic_0001>

<llo_original>
// kernel: tpu_custom_call.1
$region0: #{tpu_custom_call.1}
  #allocation0 [shape = 'u32[]', space=smem, size = 0x4, offset = 0x4, fixed_abs, tag = 'smem constant byte address 0x4 - core index']
  #allocation1 [shape = 'u32[144,128]{1,0:T(1,128)}', space=vmem, size = 0x12000, scoped, tag = 'internal scratch']
  #allocation2 [shape = 'f32[1]{0:T(128)S(6)}', space=smem, size = 0x200, scoped, tag = 'scoped memory for tpu_custom_call.1']
  %s0 = inlined_call_operand.hbm [shape: f32[16,32], index: 0, kind: input, shape index: {}]
  %s1 = inlined_call_operand.hbm [shape: f32[32,64], index: 1, kind: input, shape index: {}]
  %s2 = inlined_call_operand.vmem [shape: f32[1,64], index: 2, kind: input, shape index: {}]
  %s3 = inlined_call_operand.vmem [shape: f32[1,64], index: 3, kind: input, shape index: {}]
  %s4 = inlined_call_operand.<no memory space> [shape: f32[1], index: 4, kind: input, shape index: {}]
  %s5 = inlined_call_operand.hbm [shape: f32[1,1,16], index: 5, kind: output, shape index: {}]
  %s6 = sld [smem:[#allocation0]]
  $region38: #{tpu_custom_call.1} parent=0
    _
  %s8 = ssub.s32 1, %s6
  %s9 = scalar_select 0, %s8, %s6
  %10 = sst [smem:[#allocation2]] %s4
  $region1: #{tpu_custom_call.1} parent=0
    #allocation3 [shape = 'u8[8192]{0}', space=vmem, size = 0x2000, scoped, tag = 'input window, operand 0, single buffered']
    #allocation4 [shape = 's32[1]{0}', space=sflag, size = 0x4, scoped, tag = 'scoped memory for tpu_custom_call.1']
    #allocation5 [shape = 's32[1]{0}', space=sflag, size = 0x4, scoped, tag = 'scoped memory for tpu_custom_call.1']
    #allocation6 [shape = 'u8[16384]{0}', space=vmem, size = 0x4000, scoped, tag = 'input window, operand 1, single buffered']
    #allocation7 [shape = 's32[1]{0}', space=sflag, size = 0x4, scoped, tag = 'scoped memory for tpu_custom_call.1']
    #allocation8 [shape = 'u8[512]{0}', space=vmem, size = 0x400, scoped, tag = 'output window, operand 0, single buffered']
    %11 = vsyncpa [#allocation4], 0
    %12 = vsyncpa [#allocation7], 0
    %13 = vsyncpa [#allocation5], 0
    // Predicated region
    $region2: #{tpu_custom_call.1} parent=1 // pred_check
      _
    $region3: #{tpu_custom_call.1} parent=1 // pred_check_branch
      %15 = sbr.rel (0) target = $region5
    $region4: #{tpu_custom_call.1} parent=1 // pred_region
      %s17 = ssub.s32 256, 256
      %18 = vsyncadd [#allocation4], %s17
      %s19 = sshll.u32 [#allocation3], 4
      %s20 = int_to_ptr.vmem [resolvable:$true] %s19
      %25 = dma.hbm_to_vmem [thread:$0]  %s0, 256, %s20, [#allocation4], 128, 128, 8
    $region5: #{tpu_custom_call.1} parent=1 // pred_fallthru
      _
    // Predicated region
    $region6: #{tpu_custom_call.1} parent=1 // pred_check
      _
    $region7: #{tpu_custom_call.1} parent=1 // pred_check_branch
      %27 = sbr.rel (0) target = $region9
    $region8: #{tpu_custom_call.1} parent=1 // pred_region
      %s29 = ssub.s32 512, 512
      %30 = vsyncadd [#allocation7], %s29
      %s31 = sshll.u32 [#allocation6], 4
      %s32 = int_to_ptr.vmem [resolvable:$true] %s31
      %37 = dma.hbm_to_vmem [thread:$0]  %s1, 512, %s32, [#allocation7], 128, 128, 8
    $region9: #{tpu_custom_call.1} parent=1 // pred_fallthru
      _
    // Predicated region
    $region10: #{tpu_custom_call.1} parent=1 // pred_check
      _
    $region11: #{tpu_custom_call.1} parent=1 // pred_check_branch
      %39 = sbr.rel (0) target = $region13
    $region12: #{tpu_custom_call.1} parent=1 // pred_region
      _
    $region13: #{tpu_custom_call.1} parent=1 // pred_fallthru
      _
    // Predicated region
    $region14: #{tpu_custom_call.1} parent=1 // pred_check
      _
    $region15: #{tpu_custom_call.1} parent=1 // pred_check_branch
      %41 = sbr.rel (0) target = $region17
    $region16: #{tpu_custom_call.1} parent=1 // pred_region
      _
    $region17: #{tpu_custom_call.1} parent=1 // pred_fallthru
      _
    // Predicated region
    $region18: #{tpu_custom_call.1} parent=1 // pred_check
      _
    $region19: #{tpu_custom_call.1} parent=1 // pred_check_branch
      %43 = sbr.rel (0) target = $region21
    $region20: #{tpu_custom_call.1} parent=1 // pred_region
      _
    $region21: #{tpu_custom_call.1} parent=1 // pred_fallthru
      _
    // Predicated region
    $region22: #{tpu_custom_call.1} parent=1 // pred_check
      _
    $region23: #{tpu_custom_call.1} parent=1 // pred_check_branch
      %45 = sbr.rel (0) target = $region25
    $region24: #{tpu_custom_call.1} parent=1 // pred_region
      %46 = dma.done [#allocation4], 256
    $region25: #{tpu_custom_call.1} parent=1 // pred_fallthru
      _
    // Predicated region
    $region26: #{tpu_custom_call.1} parent=1 // pred_check
      _
    $region27: #{tpu_custom_call.1} parent=1 // pred_check_branch
      %48 = sbr.rel (0) target = $region29
    $region28: #{tpu_custom_call.1} parent=1 // pred_region
      %49 = dma.done [#allocation7], 512
    $region29: #{tpu_custom_call.1} parent=1 // pred_fallthru
      _
    %v50 = vld [vmem:[#allocation3] sm:$0xff]
    %v51 = vld [vmem:[#allocation3 + $0x8] sm:$0xff]
    %v52 = vld [vmem:[#allocation6] sm:$0xff]
    %v53 = vld [vmem:[#allocation6 + $0x8] sm:$0xff]
    %v54 = vld [vmem:[#allocation6 + $0x10] sm:$0xff]
    %v55 = vld [vmem:[#allocation6 + $0x18] sm:$0xff]
    %v56 = vld [vmem:[%s2] sm:$0x1]
    %v58 = vlaneseq
    %v59 = vshrl.u32 %v58, 7
    %v60 = vsub.s32 0, %v59
    %v61 = vrot.slane %v56, %v60
    %vm63 = vcmask 261120
    %v65 = vsel %vm63, %v50, 0
    %v68 = vsel %vm63, %v51, 0
    %70 = vmatprep.subr.mxu0 0.0
    %71 = vmatpush1.msra.mxu0 0.0
    %72 = vmatprep.subr.mxu0 0.0
    %73 = vmatpush1.msra.mxu0 0.0
    %74 = vmatprep.subr.mxu0 0.0
    %75 = vmatpush1.msra.mxu0 0.0
    %76 = vmatprep.subr.mxu0 0.0
    %77 = vmatpush1.msra.mxu0 0.0
    %78 = vmatprep.subr.mxu0 0.0
    %79 = vmatpush1.msra.mxu0 0.0
    %80 = vmatprep.subr.mxu0 0.0
    %81 = vmatpush1.msra.mxu0 0.0
    %82 = vmatprep.subr.mxu0 0.0
    %83 = vmatpush1.msra.mxu0 0.0
    %84 = vmatprep.subr.mxu0 0.0
    %85 = vmatpush1.msra.mxu0 0.0
    %86 = vmatprep.subr.mxu0 0.0
    %87 = vmatpush1.msra.mxu0 0.0
    %88 = vmatprep.subr.mxu0 0.0
    %89 = vmatpush1.msra.mxu0 0.0
    %90 = vmatprep.subr.mxu0 0.0
    %91 = vmatpush1.msra.mxu0 0.0
    %92 = vmatprep.subr.mxu0 0.0
    %93 = vmatpush1.msra.mxu0 0.0
    %94 = vmatprep.subr.mxu0 0.0
    %95 = vmatpush1.msra.mxu0 %v55
    %96 = vmatprep.subr.mxu0 0.0
    %97 = vmatpush1.msra.mxu0 %v54
    %98 = vmatprep.subr.mxu0 0.0
    %99 = vmatpush1.msra.mxu0 %v53
    %100 = vmatprep.subr.mxu0 0.0
    %101 = vmatpush1.msra.mxu0 %v52
    %102 = vmatprep.subr.mxu0 0.0
    %103 = vmatpush2.msra.mxu0 0.0
    %104 = vmatprep.subr.mxu0 0.0
    %105 = vmatpush2.msra.mxu0 0.0
    %106 = vmatprep.subr.mxu0 0.0
    %107 = vmatpush2.msra.mxu0 0.0
    %108 = vmatprep.subr.mxu0 0.0
    %109 = vmatpush2.msra.mxu0 0.0
    %110 = vmatprep.subr.mxu0 0.0
    %111 = vmatpush2.msra.mxu0 0.0
    %112 = vmatprep.subr.mxu0 0.0
    %113 = vmatpush2.msra.mxu0 0.0
    %114 = vmatprep.subr.mxu0 0.0
    %115 = vmatpush2.msra.mxu0 0.0
    %116 = vmatprep.subr.mxu0 0.0
    %117 = vmatpush2.msra.mxu0 0.0
    %118 = vmatprep.subr.mxu0 0.0
    %119 = vmatpush2.msra.mxu0 0.0
    %120 = vmatprep.subr.mxu0 0.0
    %121 = vmatpush2.msra.mxu0 0.0
    %122 = vmatprep.subr.mxu0 0.0
    %123 = vmatpush2.msra.mxu0 0.0
    %124 = vmatprep.subr.mxu0 0.0
    %125 = vmatpush2.msra.mxu0 0.0
    %126 = vmatprep.subr.mxu0 0.0
    %127 = vmatpush2.msra.mxu0 0.0
    %128 = vmatprep.subr.mxu0 0.0
    %129 = vmatpush2.msra.mxu0 0.0
    %130 = vmatprep.subr.mxu0 0.0
    %131 = vmatpush2.msra.mxu0 0.0
    %132 = vmatprep.subr.mxu0 0.0
    %133 = vmatpush2.msra.mxu0 0.0
    %134 = vmatprep.mubr.f32.mxu0 0.0
    %135 = vmatmul.mubr.f32.gmra.mxu0 %v65
    %v136 = vpop.f32.mrf.mxu0
    %v137 = vadd.f32 %v61, %v136
    %v138 = vpop.f32.mrf.mxu0
    %139 = vmatprep.mubr.f32.mxu0 0.0
    %140 = vmatmul.mubr.f32.gmra.mxu0 %v68
    %v141 = vpop.f32.mrf.mxu0
    %v142 = vadd.f32 %v61, %v141
    %v143 = vpop.f32.mrf.mxu0
    %144 = vdwg.mxu0
    %v145 = vmul.f32 %v137, 0.5
    %v146 = vmul.f32 %v142, 0.5
    %v147 = vmul.f32 %v137, 0.70710677
    %v148 = vmul.f32 %v142, 0.70710677
    %v149 = verf.f32.pop %v147
    %v150 = verf.f32.pop %v148
    %v151 = vadd.f32 %v149, 1.0
    %v152 = vadd.f32 %v150, 1.0
    %v153 = vmul.f32 %v145, %v151
    %v154 = vmul.f32 %v146, %v152
    %v155 = vld [vmem:[%s3] sm:$0x1]
    %v157 = vlaneseq
    %v158 = vshrl.u32 %v157, 7
    %v159 = vsub.s32 0, %v158
    %v160 = vrot.slane %v155, %v159
    %v162 = vmul.f32 %v153, %v160
    %v163 = vmul.f32 %v154, %v160
    %vm164 = vcmask 523264
    %v165 = vsel %vm164, %v162, 0.0
    %166 = vadd.xlane.f32.xlu0 %v165
    %v167 = vpop.xlane.xlu0 %166
    %v168 = vsel %vm164, %v163, 0.0
    %169 = vadd.xlane.f32.xlu0 %v168
    %v170 = vpop.xlane.xlu0 %169
    %s171 = sld [smem:[#allocation2]]
    %v172 = vstv %s171
    %v173 = vadd.f32 %v167, %v172
    %v174 = vadd.f32 %v170, %v172
    %v175 = vxor.u32 %v173, 2147483648
    %v176 = vxor.u32 %v174, 2147483648
    %v177 = vmul.f32 %v175, 1.442695
    %v178 = vpow.pop %v177
    %v179 = vmul.f32 %v176, 1.442695
    %v180 = vpow.pop %v179
    %v181 = vadd.f32 %v178, 1.0
    %v182 = vadd.f32 %v180, 1.0
    %v183 = vrcp.pop %v181
    %v184 = vmul.f32 1.0, %v183
    %v185 = vrcp.pop %v182
    %v186 = vmul.f32 1.0, %v185
    %v189 = vlaneseq
    %v190 = vand.u32 %v189, 127
    %v191 = vlaneseq
    %v192 = vshrl.u32 %v191, 7
    %v193 = vsub.s32 %v190, %v192
    %v194 = vrot.slane %v184, %v193
    %v195 = vadd.s32 %v190, 4294967288
    %v196 = vlaneseq
    %v197 = vshrl.u32 %v196, 7
    %v198 = vsub.s32 %v195, %v197
    %v199 = vrot.slane %v186, %v198
    %vm200 = vcmask 130112
    %v201 = vsel %vm200, %v199, %v194
    %vm203 = vcmask 122880
    %204 = vst.msk [vmem:[#allocation8] sm:$0x1] %vm203, %v201
    // Predicated region
    $region30: #{tpu_custom_call.1} parent=1 // pred_check
      _
    $region31: #{tpu_custom_call.1} parent=1 // pred_check_branch
      %206 = sbr.rel (0) target = $region33
    $region32: #{tpu_custom_call.1} parent=1 // pred_region
      %s208 = ssub.s32 16, 16
      %209 = vsyncadd [#allocation5], %s208
      %s211 = sshll.u32 [#allocation8], 4
      %s212 = int_to_ptr.vmem [resolvable:$true] %s211
      %214 = dma.vmem_to_hbm [thread:$0]  %s212, 16, %s5, [#allocation5]
    $region33: #{tpu_custom_call.1} parent=1 // pred_fallthru
      _
    // Predicated region
    $region34: #{tpu_custom_call.1} parent=1 // pred_check
      _
    $region35: #{tpu_custom_call.1} parent=1 // pred_check_branch
      %216 = sbr.rel (0) target = $region37
    $region36: #{tpu_custom_call.1} parent=1 // pred_region
      %217 = dma.done [#allocation5], 16
    $region37: #{tpu_custom_call.1} parent=1 // pred_fallthru
      _
    %218 = vsyncpa [#allocation4], 1
    %219 = vsyncpa [#allocation7], 1
    %220 = vsyncpa [#allocation5], 1

// kernel: tpu_custom_call.1
$region0: #{tpu_custom_call.1}
  #allocation0 [shape = 'u32[]', space=smem, size = 0x4, offset = 0x4, fixed_abs, tag = 'smem constant byte address 0x4 - core index']
  #allocation1 [shape = 'u32[144,128]{1,0:T(1,128)}', space=vmem, size = 0x12000, scoped, tag = 'internal scratch']
  #allocation2 [shape = 'f32[1]{0:T(128)S(6)}', space=smem, size = 0x200, scoped, tag = 'scoped memory for tpu_custom_call.1']
  %s0 = inlined_call_operand.hbm [shape: f32[16,32], index: 0, kind: input, shape index: {}]
  %s1 = inlined_call_operand.hbm [shape: f32[32,64], index: 1, kind: input, shape index: {}]
  %s2 = inlined_call_operand.vmem [shape: f32[1,64], index: 2, kind: input, shape index: {}]
  %s3 = inlined_call_operand.vmem [shape: f32[1,64], index: 3, kind: input, shape index: {}]
  %s4 = inlined_call_operand.<no memory space> [shape: f32[1], index: 4, kind: input, shape index: {}]
  %s5 = inlined_call_operand.hbm [shape: f32[1,1,16], index: 5, kind: output, shape index: {}]
  %s6 = sld [smem:[#allocation0]]
  $region38: #{tpu_custom_call.1} parent=0
    _
  %s8 = ssub.s32 1, %s6
  %s9 = scalar_select 0, %s8, %s6
  %10 = sst [smem:[#allocation2]] %s4
  $region1: #{tpu_custom_call.1} parent=0
    #allocation3 [shape = 'u8[8192]{0}', space=vmem, size = 0x2000, scoped, tag = 'input window, operand 0, single buffered']
    #allocation4 [shape = 's32[1]{0}', space=sflag, size = 0x4, scoped, tag = 'scoped memory for tpu_custom_call.1']
    #allocation5 [shape = 's32[1]{0}', space=sflag, size = 0x4, scoped, tag = 'scoped memory for tpu_custom_call.1']
    #allocation6 [shape = 'u8[16384]{0}', space=vmem, size = 0x4000, scoped, tag = 'input window, operand 1, single buffered']
    #allocation7 [shape = 's32[1]{0}', space=sflag, size = 0x4, scoped, tag = 'scoped memory for tpu_custom_call.1']
    #allocation8 [shape = 'u8[512]{0}', space=vmem, size = 0x400, scoped, tag = 'output window, operand 0, single buffered']
    %11 = vsyncpa [#allocation4], 0
    %12 = vsyncpa [#allocation7], 0
    %13 = vsyncpa [#allocation5], 0
    // Predicated region
    $region2: #{tpu_custom_call.1} parent=1 // pred_check
      _
    $region3: #{tpu_custom_call.1} parent=1 // pred_check_branch
      %15 = sbr.rel (0) target = $region5
    $region4: #{tpu_custom_call.1} parent=1 // pred_region
      %s17 = ssub.s32 256, 256
      %18 = vsyncadd [#allocation4], %s17
      %s19 = sshll.u32 [#allocation3], 4
      %s20 = int_to_ptr.vmem [resolvable:$true] %s19
      %25 = dma.hbm_to_vmem [thread:$0]  %s0, 256, %s20, [#allocation4], 128, 128, 8
    $region5: #{tpu_custom_call.1} parent=1 // pred_fallthru
      _
    // Predicated region
    $region6: #{tpu_custom_call.1} parent=1 // pred_check
      _
    $region7: #{tpu_custom_call.1} parent=1 // pred_check_branch
      %27 = sbr.rel (0) target = $region9
    $region8: #{tpu_custom_call.1} parent=1 // pred_region
      %s29 = ssub.s32 512, 512
      %30 = vsyncadd [#allocation7], %s29
      %s31 = sshll.u32 [#allocation6], 4
      %s32 = int_to_ptr.vmem [resolvable:$true] %s31
      %37 = dma.hbm_to_vmem [thread:$0]  %s1, 512, %s32, [#allocation7], 128, 128, 8
    $region9: #{tpu_custom_call.1} parent=1 // pred_fallthru
      _
    // Predicated region
    $region10: #{tpu_custom_call.1} parent=1 // pred_check
      _
    $region11: #{tpu_custom_call.1} parent=1 // pred_check_branch
      %39 = sbr.rel (0) target = $region13
    $region12: #{tpu_custom_call.1} parent=1 // pred_region
      _
    $region13: #{tpu_custom_call.1} parent=1 // pred_fallthru
      _
    // Predicated region
    $region14: #{tpu_custom_call.1} parent=1 // pred_check
      _
    $region15: #{tpu_custom_call.1} parent=1 // pred_check_branch
      %41 = sbr.rel (0) target = $region17
    $region16: #{tpu_custom_call.1} parent=1 // pred_region
      _
    $region17: #{tpu_custom_call.1} parent=1 // pred_fallthru
      _
    // Predicated region
    $region18: #{tpu_custom_call.1} parent=1 // pred_check
      _
    $region19: #{tpu_custom_call.1} parent=1 // pred_check_branch
      %43 = sbr.rel (0) target = $region21
    $region20: #{tpu_custom_call.1} parent=1 // pred_region
      _
    $region21: #{tpu_custom_call.1} parent=1 // pred_fallthru
      _
    // Predicated region
    $region22: #{tpu_custom_call.1} parent=1 // pred_check
      _
    $region23: #{tpu_custom_call.1} parent=1 // pred_check_branch
      %45 = sbr.rel (0) target = $region25
    $region24: #{tpu_custom_call.1} parent=1 // pred_region
      %46 = dma.done [#allocation4], 256
    $region25: #{tpu_custom_call.1} parent=1 // pred_fallthru
      _
    // Predicated region
    $region26: #{tpu_custom_call.1} parent=1 // pred_check
      _
    $region27: #{tpu_custom_call.1} parent=1 // pred_check_branch
      %48 = sbr.rel (0) target = $region29
    $region28: #{tpu_custom_call.1} parent=1 // pred_region
      %49 = dma.done [#allocation7], 512
    $region29: #{tpu_custom_call.1} parent=1 // pred_fallthru
      _
    %v50 = vld [vmem:[#allocation3] sm:$0xff]
    %v51 = vld [vmem:[#allocation3 + $0x8] sm:$0xff]
    %v52 = vld [vmem:[#allocation6] sm:$0xff]
    %v53 = vld [vmem:[#allocation6 + $0x8] sm:$0xff]
    %v54 = vld [vmem:[#allocation6 + $0x10] sm:$0xff]
    %v55 = vld [vmem:[#allocation6 + $0x18] sm:$0xff]
    %v56 = vld [vmem:[%s2] sm:$0x1]
    %v58 = vlaneseq
    %v59 = vshrl.u32 %v58, 7
    %v60 = vsub.s32 0, %v59
    %v61 = vrot.slane %v56, %v60
    %vm63 = vcmask 261120
    %v65 = vsel %vm63, %v50, 0
    %v68 = vsel %vm63, %v51, 0
    %70 = vmatprep.subr.mxu0 0.0
    %71 = vmatpush1.msra.mxu0 0.0
    %72 = vmatprep.subr.mxu0 0.0
    %73 = vmatpush1.msra.mxu0 0.0
    %74 = vmatprep.subr.mxu0 0.0
    %75 = vmatpush1.msra.mxu0 0.0
    %76 = vmatprep.subr.mxu0 0.0
    %77 = vmatpush1.msra.mxu0 0.0
    %78 = vmatprep.subr.mxu0 0.0
    %79 = vmatpush1.msra.mxu0 0.0
    %80 = vmatprep.subr.mxu0 0.0
    %81 = vmatpush1.msra.mxu0 0.0
    %82 = vmatprep.subr.mxu0 0.0
    %83 = vmatpush1.msra.mxu0 0.0
    %84 = vmatprep.subr.mxu0 0.0
    %85 = vmatpush1.msra.mxu0 0.0
    %86 = vmatprep.subr.mxu0 0.0
    %87 = vmatpush1.msra.mxu0 0.0
    %88 = vmatprep.subr.mxu0 0.0
    %89 = vmatpush1.msra.mxu0 0.0
    %90 = vmatprep.subr.mxu0 0.0
    %91 = vmatpush1.msra.mxu0 0.0
    %92 = vmatprep.subr.mxu0 0.0
    %93 = vmatpush1.msra.mxu0 0.0
    %94 = vmatprep.subr.mxu0 0.0
    %95 = vmatpush1.msra.mxu0 %v55
    %96 = vmatprep.subr.mxu0 0.0
    %97 = vmatpush1.msra.mxu0 %v54
    %98 = vmatprep.subr.mxu0 0.0
    %99 = vmatpush1.msra.mxu0 %v53
    %100 = vmatprep.subr.mxu0 0.0
    %101 = vmatpush1.msra.mxu0 %v52
    %102 = vmatprep.subr.mxu0 0.0
    %103 = vmatpush2.msra.mxu0 0.0
    %104 = vmatprep.subr.mxu0 0.0
    %105 = vmatpush2.msra.mxu0 0.0
    %106 = vmatprep.subr.mxu0 0.0
    %107 = vmatpush2.msra.mxu0 0.0
    %108 = vmatprep.subr.mxu0 0.0
    %109 = vmatpush2.msra.mxu0 0.0
    %110 = vmatprep.subr.mxu0 0.0
    %111 = vmatpush2.msra.mxu0 0.0
    %112 = vmatprep.subr.mxu0 0.0
    %113 = vmatpush2.msra.mxu0 0.0
    %114 = vmatprep.subr.mxu0 0.0
    %115 = vmatpush2.msra.mxu0 0.0
    %116 = vmatprep.subr.mxu0 0.0
    %117 = vmatpush2.msra.mxu0 0.0
    %118 = vmatprep.subr.mxu0 0.0
    %119 = vmatpush2.msra.mxu0 0.0
    %120 = vmatprep.subr.mxu0 0.0
    %121 = vmatpush2.msra.mxu0 0.0
    %122 = vmatprep.subr.mxu0 0.0
    %123 = vmatpush2.msra.mxu0 0.0
    %124 = vmatprep.subr.mxu0 0.0
    %125 = vmatpush2.msra.mxu0 0.0
    %126 = vmatprep.subr.mxu0 0.0
    %127 = vmatpush2.msra.mxu0 0.0
    %128 = vmatprep.subr.mxu0 0.0
    %129 = vmatpush2.msra.mxu0 0.0
    %130 = vmatprep.subr.mxu0 0.0
    %131 = vmatpush2.msra.mxu0 0.0
    %132 = vmatprep.subr.mxu0 0.0
    %133 = vmatpush2.msra.mxu0 0.0
    %134 = vmatprep.mubr.f32.mxu0 0.0
    %135 = vmatmul.mubr.f32.gmra.mxu0 %v65
    %v136 = vpop.f32.mrf.mxu0
    %v137 = vadd.f32 %v61, %v136
    %v138 = vpop.f32.mrf.mxu0
    %139 = vmatprep.mubr.f32.mxu0 0.0
    %140 = vmatmul.mubr.f32.gmra.mxu0 %v68
    %v141 = vpop.f32.mrf.mxu0
    %v142 = vadd.f32 %v61, %v141
    %v143 = vpop.f32.mrf.mxu0
    %144 = vdwg.mxu0
    %v145 = vmul.f32 %v137, 0.5
    %v146 = vmul.f32 %v142, 0.5
    %v147 = vmul.f32 %v137, 0.70710677
    %v148 = vmul.f32 %v142, 0.70710677
    %v149 = verf.f32.pop %v147
    %v150 = verf.f32.pop %v148
    %v151 = vadd.f32 %v149, 1.0
    %v152 = vadd.f32 %v150, 1.0
    %v153 = vmul.f32 %v145, %v151
    %v154 = vmul.f32 %v146, %v152
    %v155 = vld [vmem:[%s3] sm:$0x1]
    %v157 = vlaneseq
    %v158 = vshrl.u32 %v157, 7
    %v159 = vsub.s32 0, %v158
    %v160 = vrot.slane %v155, %v159
    %v162 = vmul.f32 %v153, %v160
    %v163 = vmul.f32 %v154, %v160
    %vm164 = vcmask 523264
    %v165 = vsel %vm164, %v162, 0.0
    %166 = vadd.xlane.f32.xlu0 %v165
    %v167 = vpop.xlane.xlu0 %166
    %v168 = vsel %vm164, %v163, 0.0
    %169 = vadd.xlane.f32.xlu0 %v168
    %v170 = vpop.xlane.xlu0 %169
    %s171 = sld [smem:[#allocation2]]
    %v172 = vstv %s171
    %v173 = vadd.f32 %v167, %v172
    %v174 = vadd.f32 %v170, %v172
    %v175 = vxor.u32 %v173, 2147483648
    %v176 = vxor.u32 %v174, 2147483648
    %v177 = vmul.f32 %v175, 1.442695
    %v178 = vpow.pop %v177
    %v179 = vmul.f32 %v176, 1.442695
    %v180 = vpow.pop %v179
    %v181 = vadd.f32 %v178, 1.0
    %v182 = vadd.f32 %v180, 1.0
    %v183 = vrcp.pop %v181
    %v184 = vmul.f32 1.0, %v183
    %v185 = vrcp.pop %v182
    %v186 = vmul.f32 1.0, %v185
    %v189 = vlaneseq
    %v190 = vand.u32 %v189, 127
    %v191 = vlaneseq
    %v192 = vshrl.u32 %v191, 7
    %v193 = vsub.s32 %v190, %v192
    %v194 = vrot.slane %v184, %v193
    %v195 = vadd.s32 %v190, 4294967288
    %v196 = vlaneseq
    %v197 = vshrl.u32 %v196, 7
    %v198 = vsub.s32 %v195, %v197
    %v199 = vrot.slane %v186, %v198
    %vm200 = vcmask 130112
    %v201 = vsel %vm200, %v199, %v194
    %vm203 = vcmask 122880
    %204 = vst.msk [vmem:[#allocation8] sm:$0x1] %vm203, %v201
    // Predicated region
    $region30: #{tpu_custom_call.1} parent=1 // pred_check
      _
    $region31: #{tpu_custom_call.1} parent=1 // pred_check_branch
      %206 = sbr.rel (0) target = $region33
    $region32: #{tpu_custom_call.1} parent=1 // pred_region
      %s208 = ssub.s32 16, 16
      %209 = vsyncadd [#allocation5], %s208
      %s211 = sshll.u32 [#allocation8], 4
      %s212 = int_to_ptr.vmem [resolvable:$true] %s211
      %214 = dma.vmem_to_hbm [thread:$0]  %s212, 16, %s5, [#allocation5]
    $region33: #{tpu_custom_call.1} parent=1 // pred_fallthru
      _
    // Predicated region
    $region34: #{tpu_custom_call.1} parent=1 // pred_check
      _
    $region35: #{tpu_custom_call.1} parent=1 // pred_check_branch
      %216 = sbr.rel (0) target = $region37
    $region36: #{tpu_custom_call.1} parent=1 // pred_region
      %217 = dma.done [#allocation5], 16
    $region37: #{tpu_custom_call.1} parent=1 // pred_fallthru
      _
    %218 = vsyncpa [#allocation4], 1
    %219 = vsyncpa [#allocation7], 1
    %220 = vsyncpa [#allocation5], 1

</llo_original>
